<compile_context>
chip_gen: v7x
topology: tpu7x:2x2x1
jax: 0.10.0
libtpu: 0.0.40
codegen_flags: <defaults>
</compile_context>

<pallas_src>
import math

import jax
import jax.numpy as jnp
from jax.experimental import pallas as pl
from jax.experimental.pallas import tpu as pltpu


def _identity_kernel(x_ref, o_ref):
    # Placeholder for the (abstract) SPModel.forward body: pass-through.
    # A concrete subclass drops its real compute here (keep
    # preferred_element_type=jnp.float32 on any jnp.dot it adds).
    o_ref[...] = x_ref[...]


def _sublane_min(dtype) -> int:
    """Minimum sublane multiple for the dtype (f32:8, bf16:16, int8:32)."""
    itemsize = jnp.dtype(dtype).itemsize
    return {4: 8, 2: 16, 1: 32}.get(itemsize, 8)


def _default_block_bytes() -> int:
    """Per-buffer VMEM block target, scaled by TPU generation.

    v5e (~0.8 TB/s HBM): 2 MiB already amortizes the ~0.35 us grid-step
    overhead; keep blocks modest (single vst slot, small scoped VMEM).
    v6e/v7x (1.4-3.2 TB/s): 4 MiB sits at the measured copy-roofline knee and
    keeps the per-step tax small while staying far under v7x's 64 MiB VMEM.
    """
    try:
        kind = jax.devices()[0].device_kind.lower()
    except Exception:  # defensive: the 4 MiB default is safe everywhere
        kind = ""
    if "v5" in kind:
        return 2 * 1024 * 1024
    return 4 * 1024 * 1024


def sp_model_forward(
    x: jax.Array,
    *,
    run_scaffold_kernel: bool = False,
    donate_input: bool = False,
    target_block_bytes: int | None = None,
    buffer_count: int = 2,
) -> jax.Array:
    """Pallas 'forward' for the abstract SPModel.

    Default path: true short-circuit (return x) -- the abstract forward defines
    no compute, so the optimal kernel is no kernel.  With
    `run_scaffold_kernel=True` a lane-dense tiled identity copy runs through
    Pallas; a concrete subclass replaces the kernel body with real compute.

    `donate_input=True` adds input_output_aliases={0: 0}.  That is only a win
    when the caller actually donates x (jit donate_argnums / x not live after
    the call) and is only CORRECT while the kernel stays strictly blockwise
    (output block i depends only on input block i).  Subclasses with wider
    access patterns (conv, attention, ...) must keep it False.
    """
    if not run_scaffold_kernel:
        return x

    orig_shape = x.shape
    dtype = x.dtype
    n = math.prod(orig_shape) if orig_shape else 1
    itemsize = jnp.dtype(dtype).itemsize
    sub_min = _sublane_min(dtype)
    if target_block_bytes is None:
        target_block_bytes = _default_block_bytes()

    if n == 0:
        return x

    flat = x.reshape(n)

    # ---- tiny inputs (< one 128-lane row): single full-array block ---------
    if n < 128:
        out2d = pl.pallas_call(
            _identity_kernel,
            out_shape=jax.ShapeDtypeStruct((1, n), dtype),
        )(flat.reshape(1, n))
        return out2d.reshape(orig_shape)

    # ---- split off the <128-element ragged tail (no full-array pad/slice) --
    main_n = (n // 128) * 128
    tail = flat[main_n:] if main_n != n else None
    main = flat[:main_n]

    # ---- choose a lane-dense 2-D slab (rows, lane) --------------------------
    # Prefer the widest lane width that still leaves >= sub_min rows (so the
    # tile is a clean (8,128)-multiple); otherwise take the widest that divides.
    lane = 128
    for cand in (4096, 2048, 1024, 512, 256, 128):
        if main_n % cand == 0 and (main_n // cand) >= sub_min:
            lane = cand
            break
    else:
        for cand in (4096, 2048, 1024, 512, 256, 128):
            if main_n % cand == 0:
                lane = cand
                break
    rows = main_n // lane

    # ---- dtype-aware tile_rows sized against the per-generation block target
    tile_rows = max(
        sub_min,
        (target_block_bytes // (lane * itemsize)) // sub_min * sub_min,
    )
    if tile_rows > rows:
        # Block rows must be a multiple of sub_min OR equal to the array dim.
        tile_rows = rows if rows < sub_min else (rows // sub_min) * sub_min

    # ---- v7x megacore: ensure >= 2 parallel grid steps when rows allow it ---
    if pl.cdiv(rows, tile_rows) < 2 and rows >= 2 * sub_min:
        tile_rows = max(sub_min, (rows // 2) // sub_min * sub_min)
    grid_steps = pl.cdiv(rows, tile_rows)

    # ---- pipeline depth knob (default double-buffering) ---------------------
    spec_kwargs = {}
    if buffer_count != 2:
        spec_kwargs["pipeline_mode"] = pl.Buffered(buffer_count)
    in_spec = pl.BlockSpec((tile_rows, lane), lambda i: (i, 0), **spec_kwargs)
    out_spec = pl.BlockSpec((tile_rows, lane), lambda i: (i, 0))

    # ---- VMEM limit derived from actual block usage (+slack), not a flat cap
    tile_bytes = tile_rows * lane * itemsize
    vmem_limit = max(
        8 * 1024 * 1024,
        (max(buffer_count, 2) + 2) * tile_bytes + 2 * 1024 * 1024,
    )
    vmem_limit = min(vmem_limit, 56 * 1024 * 1024)  # headroom on v7x (64 MiB)

    # Aliasing only when the caller donates x (and the shape is un-ragged, so
    # the kernel operand really is the caller's buffer).
    aliases = {0: 0} if (donate_input and tail is None) else {}

    out2d = pl.pallas_call(
        _identity_kernel,
        out_shape=jax.ShapeDtypeStruct((rows, lane), dtype),
        grid=(grid_steps,),
        in_specs=[in_spec],
        out_specs=out_spec,
        compiler_params=pltpu.CompilerParams(
            dimension_semantics=("parallel",),
            vmem_limit_bytes=int(vmem_limit),
        ),
        cost_estimate=pl.CostEstimate(
            flops=0,
            transcendentals=0,
            bytes_accessed=2 * main_n * itemsize,
        ),
        input_output_aliases=aliases,
    )(main.reshape(rows, lane))

    out_flat = out2d.reshape(main_n)
    if tail is not None:
        # TODO(synk): a concrete subclass with real compute must also process
        # the <128-element tail; for the identity scaffold it passes through.
        out_flat = jnp.concatenate([out_flat, tail])
    return out_flat.reshape(orig_shape)


if __name__ == "__main__":
    key = jax.random.PRNGKey(0)
    # Small NCHW input consistent with what a concrete SPModel subclass would
    # consume: batch=2, channels=4, spatial=16x16.
    x = jax.random.normal(key, (2, 4, 16, 16), dtype=jnp.float32)

    # 1) Default path: abstract forward -> true short-circuit (0 HBM traffic).
    y0 = jax.block_until_ready(sp_model_forward(x))
    assert y0.shape == x.shape and y0.dtype == x.dtype
    assert bool(jnp.allclose(y0, x))

    # 2) Pallas scaffold path: lane-dense tiled identity copy.
    y1 = jax.block_until_ready(sp_model_forward(x, run_scaffold_kernel=True))
    assert y1.shape == x.shape and y1.dtype == x.dtype
    assert bool(jnp.allclose(y1, x))

    # 3) Ragged size: tail split off, no full-array pad/slice round trip.
    xr = jax.random.normal(key, (2, 131), dtype=jnp.float32)
    yr = jax.block_until_ready(sp_model_forward(xr, run_scaffold_kernel=True))
    assert yr.shape == xr.shape and bool(jnp.allclose(yr, xr))

    # 4) Tiny input (< one 128-lane row): whole-array block.
    xt = jax.random.normal(key, (3, 5, 7), dtype=jnp.float32)
    yt = jax.block_until_ready(sp_model_forward(xt, run_scaffold_kernel=True))
    assert yt.shape == xt.shape and bool(jnp.allclose(yt, xt))

    print("KERNEL_OK")
</pallas_src>

<mosaic_0001>
module attributes {stable_mosaic.version = 11 : i64} {
  func.func @_identity_kernel(%arg0: i32, %arg1: memref<8x256xf32, #tpu.memory_space<vmem>>, %arg2: memref<8x256xf32, #tpu.memory_space<vmem>>) attributes {dimension_semantics = [#tpu.dimension_semantics<parallel>], iteration_bounds = array<i64: 1>, scalar_prefetch = 0 : i64, scratch_operands = 0 : i64, tpu.core_type = #tpu.core_type<tc>, window_params = [{transform_indices = @transform_0, window_bounds = array<i64: 8, 256>}, {transform_indices = @transform_1, window_bounds = array<i64: 8, 256>}]} {
    %c0 = arith.constant 0 : index
    %c0_0 = arith.constant 0 : index
    %0 = vector.load %arg1[%c0, %c0_0] : memref<8x256xf32, #tpu.memory_space<vmem>>, vector<8x256xf32>
    %c0_1 = arith.constant 0 : index
    %c0_2 = arith.constant 0 : index
    %1 = vector.load %arg2[%c0_1, %c0_2] : memref<8x256xf32, #tpu.memory_space<vmem>>, vector<8x256xf32>
    tpu.vector_store %arg2[%c0_1, %c0_2], %0 {strides = array<i32>} : memref<8x256xf32, #tpu.memory_space<vmem>>, vector<8x256xf32>,
    return
  }
  func.func @transform_0(%arg0: i32) -> (i32, i32) {
    %c0_i32 = arith.constant 0 : i32
    %c0_i32_0 = arith.constant 0 : i32
    return %arg0, %c0_i32 : i32, i32
  }
  func.func @transform_1(%arg0: i32) -> (i32, i32) {
    %c0_i32 = arith.constant 0 : i32
    %c0_i32_0 = arith.constant 0 : i32
    return %arg0, %c0_i32 : i32, i32
  }
}

</mosaic_0001>

<llo_original>
// kernel: tpu_custom_call.1
$region0: #{tpu_custom_call.1}
  #allocation0 [shape = 'u32[]', space=smem, size = 0x4, offset = 0x4, fixed_abs, tag = 'smem constant byte address 0x4 - core index']
  #allocation1 [shape = 'u32[144,128]{1,0:T(1,128)}', space=vmem, size = 0x12000, scoped, tag = 'internal scratch']
  %s0 = inlined_call_operand.hbm [shape: f32[8,256], index: 0, kind: input, shape index: {}]
  %s1 = inlined_call_operand.hbm [shape: f32[8,256], index: 1, kind: output, shape index: {}]
  %s2 = sld [smem:[#allocation0]]
  $region18: #{tpu_custom_call.1} parent=0
    _
  %s4 = ssub.s32 1, %s2
  %s5 = scalar_select 0, %s4, %s2
  $region1: #{tpu_custom_call.1} parent=0
    #allocation2 [shape = 'u8[8192]{0}', space=vmem, size = 0x2000, scoped, tag = 'input window, operand 0, single buffered']
    #allocation3 [shape = 's32[1]{0}', space=sflag, size = 0x4, scoped, tag = 'scoped memory for tpu_custom_call.1']
    #allocation4 [shape = 's32[1]{0}', space=sflag, size = 0x4, scoped, tag = 'scoped memory for tpu_custom_call.1']
    #allocation5 [shape = 'u8[8192]{0}', space=vmem, size = 0x2000, scoped, tag = 'output window, operand 0, single buffered']
    %6 = vsyncpa [#allocation3], 0
    %7 = vsyncpa [#allocation4], 0
    // Predicated region
    $region2: #{tpu_custom_call.1} parent=1 // pred_check
      _
    $region3: #{tpu_custom_call.1} parent=1 // pred_check_branch
      %9 = sbr.rel (0) target = $region5
    $region4: #{tpu_custom_call.1} parent=1 // pred_region
      %s11 = ssub.s32 256, 256
      %12 = vsyncadd [#allocation3], %s11
      %s14 = sshll.u32 [#allocation2], 4
      %s15 = int_to_ptr.vmem [resolvable:$true] %s14
      %17 = dma.hbm_to_vmem [thread:$0]  %s0, 256, %s15, [#allocation3]
    $region5: #{tpu_custom_call.1} parent=1 // pred_fallthru
      _
    // Predicated region
    $region6: #{tpu_custom_call.1} parent=1 // pred_check
      _
    $region7: #{tpu_custom_call.1} parent=1 // pred_check_branch
      %19 = sbr.rel (0) target = $region9
    $region8: #{tpu_custom_call.1} parent=1 // pred_region
      %20 = dma.done [#allocation3], 256
    $region9: #{tpu_custom_call.1} parent=1 // pred_fallthru
      _
    %v21 = vld [vmem:[#allocation2] sm:$0xff]
    %v22 = vld [vmem:[#allocation2 + $0x8] sm:$0xff]
    %23 = vst [vmem:[#allocation5] sm:$0xff] %v21
    %24 = vst [vmem:[#allocation5 + $0x8] sm:$0xff] %v22
    // Predicated region
    $region10: #{tpu_custom_call.1} parent=1 // pred_check
      _
    $region11: #{tpu_custom_call.1} parent=1 // pred_check_branch
      %26 = sbr.rel (0) target = $region13
    $region12: #{tpu_custom_call.1} parent=1 // pred_region
      %s28 = ssub.s32 256, 256
      %29 = vsyncadd [#allocation4], %s28
      %s31 = sshll.u32 [#allocation5], 4
      %s32 = int_to_ptr.vmem [resolvable:$true] %s31
      %34 = dma.vmem_to_hbm [thread:$0]  %s32, 256, %s1, [#allocation4]
    $region13: #{tpu_custom_call.1} parent=1 // pred_fallthru
      _
    // Predicated region
    $region14: #{tpu_custom_call.1} parent=1 // pred_check
      _
    $region15: #{tpu_custom_call.1} parent=1 // pred_check_branch
      %36 = sbr.rel (0) target = $region17
    $region16: #{tpu_custom_call.1} parent=1 // pred_region
      %37 = dma.done [#allocation4], 256
    $region17: #{tpu_custom_call.1} parent=1 // pred_fallthru
      _
    %38 = vsyncpa [#allocation3], 1
    %39 = vsyncpa [#allocation4], 1

</llo_original>
